<compile_context>
chip_gen: v7x
topology: tpu7x:2x2x1
jax: 0.10.0
libtpu: 0.0.40
codegen_flags: <defaults>
</compile_context>

<pallas_src>
import functools

import jax
import jax.numpy as jnp
from jax.experimental import pallas as pl
from jax.experimental.pallas import tpu as pltpu


def _round_up(n, m):
    return (n + m - 1) // m * m


def mlp_kernel(x_ref, w1_ref, b1_ref, w2_ref, b2_ref, o_ref):
    """Fused 2-layer MLP on one batch tile: relu(x @ W1 + b1) @ W2 + b2."""
    # Cast on the VMEM tile (no-op for f32; avoids a separate wrapper-side
    # XLA cast pass over x in HBM when bf16 compute is requested).
    x = x_ref[...].astype(w1_ref.dtype)
    # Layer 1: MXU matmul with f32 accumulation, bias + ReLU on the VPU in f32.
    h = jnp.dot(x, w1_ref[...], preferred_element_type=jnp.float32)
    h = jnp.maximum(h + b1_ref[...], 0.0)
    # Layer 2: cast hidden to the weight dtype (no-op for f32), f32 accumulate,
    # f32 bias add, then store in the output dtype.  Output tile is only
    # num_classes lanes wide, so only those bytes ever reach HBM.
    y = jnp.dot(h.astype(w2_ref.dtype), w2_ref[...],
                preferred_element_type=jnp.float32)
    o_ref[...] = (y + b2_ref[...]).astype(o_ref.dtype)


def prepare_params(w1, b1, w2, b2, *, compute_dtype=jnp.float32):
    """One-time parameter preprocessing (NOT in the per-call path).

    * transpose nn.Linear weights [out, in] -> [in, out]
    * zero-pad the hidden dim to a 128-lane multiple (lane-dense first matmul;
      padded lanes carry zero weight + zero bias so the result is exact)
    * the class dim is NOT padded: the output stays exactly num_classes wide
    * biases kept in f32 and reshaped to 2-D rows for VMEM tiles
    """
    hidden, _ = w1.shape
    num_classes = w2.shape[0]
    h_pad = _round_up(hidden, 128)

    w1_p = jnp.pad(w1.T.astype(compute_dtype), ((0, 0), (0, h_pad - hidden)))
    b1_p = jnp.pad(b1.astype(jnp.float32), (0, h_pad - hidden)).reshape(1, h_pad)
    w2_p = jnp.pad(w2.T.astype(compute_dtype), ((0, h_pad - hidden), (0, 0)))
    b2_p = b2.astype(jnp.float32).reshape(1, num_classes)
    return (w1_p, b1_p, w2_p, b2_p)


@functools.partial(jax.jit, static_argnames=("out_dtype",))
def neural_net_forward(x, params, out_dtype=jnp.float32):
    """Forward pass matching PyTorch NeuralNet.forward.

    x      : [B, input_size] float32 (kept f32 in HBM; casts happen in-kernel)
    params : output of prepare_params (pre-transposed / hidden-padded weights)
    returns: [B, num_classes] out_dtype (no padding, no post-kernel slice)
    """
    w1_p, b1_p, w2_p, b2_p = params
    B, K = x.shape
    H = w1_p.shape[1]           # padded hidden (multiple of 128)
    C = w2_p.shape[1]           # exact num_classes (last dim = full array)

    # Batch tiling:
    #  * small B: a single tile covering the whole batch (block dim == full
    #    array dim, so no 8-row alignment needed).
    #  * large B: 1024-2048-row tiles to amortize per-step overhead, split
    #    into >= 2 tiles so ("parallel",) shards across both TCs on v7x.
    #    No wrapper-side row padding: grid = cdiv(B, TB); the clipped boundary
    #    block is safe because rows are independent and clipped rows are never
    #    written back.
    if B <= 512:
        TB = B
    else:
        TB = min(2048, _round_up(pl.cdiv(B, 2), 8))
    grid = (pl.cdiv(B, TB),)

    flops = 2 * B * K * H + 2 * B * H * C
    bytes_accessed = (x.size * x.dtype.itemsize
                      + sum(p.size * p.dtype.itemsize for p in params)
                      + B * C * jnp.dtype(out_dtype).itemsize)

    out = pl.pallas_call(
        mlp_kernel,
        out_shape=jax.ShapeDtypeStruct((B, C), out_dtype),
        grid=grid,
        in_specs=[
            pl.BlockSpec((TB, K), lambda i: (i, 0)),   # x: blocked over batch
            pl.BlockSpec((K, H), lambda i: (0, 0)),    # W1: VMEM-resident
            pl.BlockSpec((1, H), lambda i: (0, 0)),    # b1: resident
            pl.BlockSpec((H, C), lambda i: (0, 0)),    # W2: resident
            pl.BlockSpec((1, C), lambda i: (0, 0)),    # b2: resident
        ],
        out_specs=pl.BlockSpec((TB, C), lambda i: (i, 0)),
        compiler_params=pltpu.CompilerParams(
            dimension_semantics=("parallel",)),        # megacore batch split (v7x)
        cost_estimate=pl.CostEstimate(
            flops=flops, transcendentals=0, bytes_accessed=bytes_accessed),
    )(x, w1_p, b1_p, w2_p, b2_p)
    return out


if __name__ == "__main__":
    # Small shapes consistent with NeuralNet(input_size, hidden, classes).
    batch, input_size, hidden_size, num_classes = 8, 64, 32, 10

    key = jax.random.PRNGKey(0)
    kx, kw1, kb1, kw2, kb2 = jax.random.split(key, 5)

    x = jax.random.normal(kx, (batch, input_size), dtype=jnp.float32)

    # PyTorch-style init: U(-1/sqrt(fan_in), 1/sqrt(fan_in)), nn.Linear layout.
    lim1 = 1.0 / (input_size ** 0.5)
    lim2 = 1.0 / (hidden_size ** 0.5)
    w1 = jax.random.uniform(kw1, (hidden_size, input_size), jnp.float32, -lim1, lim1)
    b1 = jax.random.uniform(kb1, (hidden_size,), jnp.float32, -lim1, lim1)
    w2 = jax.random.uniform(kw2, (num_classes, hidden_size), jnp.float32, -lim2, lim2)
    b2 = jax.random.uniform(kb2, (num_classes,), jnp.float32, -lim2, lim2)

    # One-time parameter prep (transpose / hidden-pad) outside the per-call
    # path.  On v6e/v7x pass compute_dtype=jnp.bfloat16 (and optionally
    # out_dtype=jnp.bfloat16) for less HBM traffic; f32 here to hit 1e-5 tol.
    params = prepare_params(w1, b1, w2, b2, compute_dtype=jnp.float32)

    out = neural_net_forward(x, params)
    out = jax.block_until_ready(out)

    # Reference check against plain JAX (same math as the PyTorch forward).
    ref = jnp.maximum(x @ w1.T + b1, 0.0) @ w2.T + b2
    assert out.shape == (batch, num_classes)
    assert jnp.allclose(out, ref, atol=1e-5, rtol=1e-5)

    print("KERNEL_OK")
</pallas_src>

<mosaic_0001>
module attributes {stable_mosaic.version = 11 : i64} {
  func.func @mlp_kernel(%arg0: i32, %arg1: memref<8x64xf32, #tpu.memory_space<vmem>>, %arg2: memref<64x128xf32, #tpu.memory_space<vmem>>, %arg3: memref<1x128xf32, #tpu.memory_space<vmem>>, %arg4: memref<128x10xf32, #tpu.memory_space<vmem>>, %arg5: memref<1x10xf32, #tpu.memory_space<vmem>>, %arg6: memref<8x10xf32, #tpu.memory_space<vmem>>) attributes {dimension_semantics = [#tpu.dimension_semantics<parallel>], iteration_bounds = array<i64: 1>, scalar_prefetch = 0 : i64, scratch_operands = 0 : i64, tpu.core_type = #tpu.core_type<tc>, window_params = [{transform_indices = @transform_0, window_bounds = array<i64: 8, 64>}, {pipeline_mode = #tpu.pipeline_mode<synchronous>, transform_indices = @transform_1, window_bounds = array<i64: 64, 128>}, {pipeline_mode = #tpu.pipeline_mode<synchronous>, transform_indices = @transform_2, window_bounds = array<i64: 1, 128>}, {pipeline_mode = #tpu.pipeline_mode<synchronous>, transform_indices = @transform_3, window_bounds = array<i64: 128, 10>}, {pipeline_mode = #tpu.pipeline_mode<synchronous>, transform_indices = @transform_4, window_bounds = array<i64: 1, 10>}, {transform_indices = @transform_5, window_bounds = array<i64: 8, 10>}]} {
    %c0 = arith.constant 0 : index
    %c0_0 = arith.constant 0 : index
    %0 = vector.load %arg1[%c0, %c0_0] : memref<8x64xf32, #tpu.memory_space<vmem>>, vector<8x64xf32>
    %c0_1 = arith.constant 0 : index
    %c0_2 = arith.constant 0 : index
    %1 = vector.load %arg2[%c0_1, %c0_2] : memref<64x128xf32, #tpu.memory_space<vmem>>, vector<64x128xf32>
    %cst = arith.constant dense<0.000000e+00> : vector<8x128xf32>
    %2 = tpu.matmul %0, %1, %cst {dimension_numbers = #tpu.dot_dimension_numbers<[1], [0], [0], [1], [0, 0, 1, 1], [], []>} : vector<8x64xf32>, vector<64x128xf32>, vector<8x128xf32> -> vector<8x128xf32>
    %c0_3 = arith.constant 0 : index
    %c0_4 = arith.constant 0 : index
    %3 = vector.load %arg3[%c0_3, %c0_4] : memref<1x128xf32, #tpu.memory_space<vmem>>, vector<1x128xf32>
    %4 = vector.broadcast %3 : vector<1x128xf32> to vector<8x128xf32>
    %5 = arith.addf %2, %4 : vector<8x128xf32>
    %cst_5 = arith.constant 0.000000e+00 : f32
    %6 = vector.broadcast %cst_5 : f32 to vector<8x128xf32>
    %7 = arith.maximumf %5, %6 : vector<8x128xf32>
    %c0_6 = arith.constant 0 : index
    %c0_7 = arith.constant 0 : index
    %8 = vector.load %arg4[%c0_6, %c0_7] : memref<128x10xf32, #tpu.memory_space<vmem>>, vector<128x10xf32>
    %cst_8 = arith.constant dense<0.000000e+00> : vector<8x10xf32>
    %9 = tpu.matmul %7, %8, %cst_8 {dimension_numbers = #tpu.dot_dimension_numbers<[1], [0], [0], [1], [0, 0, 1, 1], [], []>} : vector<8x128xf32>, vector<128x10xf32>, vector<8x10xf32> -> vector<8x10xf32>
    %c0_9 = arith.constant 0 : index
    %c0_10 = arith.constant 0 : index
    %10 = vector.load %arg5[%c0_9, %c0_10] : memref<1x10xf32, #tpu.memory_space<vmem>>, vector<1x10xf32>
    %11 = vector.broadcast %10 : vector<1x10xf32> to vector<8x10xf32>
    %12 = arith.addf %9, %11 : vector<8x10xf32>
    %c0_11 = arith.constant 0 : index
    %c0_12 = arith.constant 0 : index
    %13 = vector.load %arg6[%c0_11, %c0_12] : memref<8x10xf32, #tpu.memory_space<vmem>>, vector<8x10xf32>
    tpu.vector_store %arg6[%c0_11, %c0_12], %12 {strides = array<i32>} : memref<8x10xf32, #tpu.memory_space<vmem>>, vector<8x10xf32>,
    return
  }
  func.func @transform_0(%arg0: i32) -> (i32, i32) {
    %c0_i32 = arith.constant 0 : i32
    %c0_i32_0 = arith.constant 0 : i32
    return %arg0, %c0_i32 : i32, i32
  }
  func.func @transform_1(%arg0: i32) -> (i32, i32) {
    %c0_i32 = arith.constant 0 : i32
    %c0_i32_0 = arith.constant 0 : i32
    %c0_i32_1 = arith.constant 0 : i32
    return %c0_i32, %c0_i32_0 : i32, i32
  }
  func.func @transform_2(%arg0: i32) -> (i32, i32) {
    %c0_i32 = arith.constant 0 : i32
    %c0_i32_0 = arith.constant 0 : i32
    %c0_i32_1 = arith.constant 0 : i32
    return %c0_i32, %c0_i32_0 : i32, i32
  }
  func.func @transform_3(%arg0: i32) -> (i32, i32) {
    %c0_i32 = arith.constant 0 : i32
    %c0_i32_0 = arith.constant 0 : i32
    %c0_i32_1 = arith.constant 0 : i32
    return %c0_i32, %c0_i32_0 : i32, i32
  }
  func.func @transform_4(%arg0: i32) -> (i32, i32) {
    %c0_i32 = arith.constant 0 : i32
    %c0_i32_0 = arith.constant 0 : i32
    %c0_i32_1 = arith.constant 0 : i32
    return %c0_i32, %c0_i32_0 : i32, i32
  }
  func.func @transform_5(%arg0: i32) -> (i32, i32) {
    %c0_i32 = arith.constant 0 : i32
    %c0_i32_0 = arith.constant 0 : i32
    return %arg0, %c0_i32 : i32, i32
  }
}

</mosaic_0001>

<llo_original>
// kernel: neural_net_forward.1
$region0: #{neural_net_forward.1}
  #allocation0 [shape = 'u32[]', space=smem, size = 0x4, offset = 0x4, fixed_abs, tag = 'smem constant byte address 0x4 - core index']
  #allocation1 [shape = 'u32[144,128]{1,0:T(1,128)}', space=vmem, size = 0x12000, scoped, tag = 'internal scratch']
  %s0 = inlined_call_operand.vmem [shape: f32[8,64], index: 0, kind: input, shape index: {}]
  %s1 = inlined_call_operand.vmem [shape: f32[64,128], index: 1, kind: input, shape index: {}]
  %s2 = inlined_call_operand.vmem [shape: f32[1,128], index: 2, kind: input, shape index: {}]
  %s3 = inlined_call_operand.vmem [shape: f32[128,10], index: 3, kind: input, shape index: {}]
  %s4 = inlined_call_operand.vmem [shape: f32[1,10], index: 4, kind: input, shape index: {}]
  %s5 = inlined_call_operand.hbm [shape: f32[8,10], index: 5, kind: output, shape index: {}]
  %s6 = sld [smem:[#allocation0]]
  $region30: #{neural_net_forward.1} parent=0
    _
  %s8 = ssub.s32 1, %s6
  %s9 = scalar_select 0, %s8, %s6
  $region1: #{neural_net_forward.1} parent=0
    #allocation2 [shape = 'u8[4096]{0}', space=vmem, size = 0x1000, scoped, tag = 'output window, operand 0, single buffered']
    #allocation3 [shape = 's32[1]{0}', space=sflag, size = 0x4, scoped, tag = 'scoped memory for neural_net_forward.1']
    %10 = vsyncpa [#allocation3], 0
    // Predicated region
    $region2: #{neural_net_forward.1} parent=1 // pred_check
      _
    $region3: #{neural_net_forward.1} parent=1 // pred_check_branch
      %12 = sbr.rel (0) target = $region5
    $region4: #{neural_net_forward.1} parent=1 // pred_region
      _
    $region5: #{neural_net_forward.1} parent=1 // pred_fallthru
      _
    // Predicated region
    $region6: #{neural_net_forward.1} parent=1 // pred_check
      _
    $region7: #{neural_net_forward.1} parent=1 // pred_check_branch
      %14 = sbr.rel (0) target = $region9
    $region8: #{neural_net_forward.1} parent=1 // pred_region
      _
    $region9: #{neural_net_forward.1} parent=1 // pred_fallthru
      _
    // Predicated region
    $region10: #{neural_net_forward.1} parent=1 // pred_check
      _
    $region11: #{neural_net_forward.1} parent=1 // pred_check_branch
      %16 = sbr.rel (0) target = $region13
    $region12: #{neural_net_forward.1} parent=1 // pred_region
      _
    $region13: #{neural_net_forward.1} parent=1 // pred_fallthru
      _
    // Predicated region
    $region14: #{neural_net_forward.1} parent=1 // pred_check
      _
    $region15: #{neural_net_forward.1} parent=1 // pred_check_branch
      %18 = sbr.rel (0) target = $region17
    $region16: #{neural_net_forward.1} parent=1 // pred_region
      _
    $region17: #{neural_net_forward.1} parent=1 // pred_fallthru
      _
    // Predicated region
    $region18: #{neural_net_forward.1} parent=1 // pred_check
      _
    $region19: #{neural_net_forward.1} parent=1 // pred_check_branch
      %20 = sbr.rel (0) target = $region21
    $region20: #{neural_net_forward.1} parent=1 // pred_region
      _
    $region21: #{neural_net_forward.1} parent=1 // pred_fallthru
      _
    %v21 = vld [vmem:[%s0] sm:$0xff]
    %v22 = vld [vmem:[%s1] sm:$0xff]
    %v23 = vld [vmem:[%s1 + $0x8] sm:$0xff]
    %v24 = vld [vmem:[%s1 + $0x10] sm:$0xff]
    %v25 = vld [vmem:[%s1 + $0x18] sm:$0xff]
    %v26 = vld [vmem:[%s1 + $0x20] sm:$0xff]
    %v27 = vld [vmem:[%s1 + $0x28] sm:$0xff]
    %v28 = vld [vmem:[%s1 + $0x30] sm:$0xff]
    %v29 = vld [vmem:[%s1 + $0x38] sm:$0xff]
    %v30 = vld [vmem:[%s2] sm:$0x1]
    %v32 = vlaneseq
    %v33 = vshrl.u32 %v32, 7
    %v34 = vsub.s32 0, %v33
    %v35 = vrot.slane %v30, %v34
    %vm37 = vcmask 523264
    %v39 = vsel %vm37, %v21, 0
    %41 = vmatprep.subr.mxu0 0.0
    %42 = vmatpush1.msra.mxu0 %v22
    %43 = vmatprep.subr.mxu0 0.0
    %44 = vmatpush1.msra.mxu0 %v23
    %45 = vmatprep.subr.mxu0 0.0
    %46 = vmatpush1.msra.mxu0 %v24
    %47 = vmatprep.subr.mxu0 0.0
    %48 = vmatpush1.msra.mxu0 %v25
    %49 = vmatprep.subr.mxu0 0.0
    %50 = vmatpush1.msra.mxu0 %v26
    %51 = vmatprep.subr.mxu0 0.0
    %52 = vmatpush1.msra.mxu0 %v27
    %53 = vmatprep.subr.mxu0 0.0
    %54 = vmatpush1.msra.mxu0 %v28
    %55 = vmatprep.subr.mxu0 0.0
    %56 = vmatpush1.msra.mxu0 %v29
    %57 = vmatprep.subr.mxu0 0.0
    %58 = vmatpush1.msra.mxu0 0.0
    %59 = vmatprep.subr.mxu0 0.0
    %60 = vmatpush1.msra.mxu0 0.0
    %61 = vmatprep.subr.mxu0 0.0
    %62 = vmatpush1.msra.mxu0 0.0
    %63 = vmatprep.subr.mxu0 0.0
    %64 = vmatpush1.msra.mxu0 0.0
    %65 = vmatprep.subr.mxu0 0.0
    %66 = vmatpush1.msra.mxu0 0.0
    %67 = vmatprep.subr.mxu0 0.0
    %68 = vmatpush1.msra.mxu0 0.0
    %69 = vmatprep.subr.mxu0 0.0
    %70 = vmatpush1.msra.mxu0 0.0
    %71 = vmatprep.subr.mxu0 0.0
    %72 = vmatpush1.msra.mxu0 0.0
    %73 = vmatprep.subr.mxu0 0.0
    %74 = vmatpush1.msra.mxu0 0.0
    %75 = vmatprep.subr.mxu0 0.0
    %76 = vmatpush1.msra.mxu0 0.0
    %77 = vmatprep.subr.mxu0 0.0
    %78 = vmatpush1.msra.mxu0 0.0
    %79 = vmatprep.subr.mxu0 0.0
    %80 = vmatpush1.msra.mxu0 0.0
    %81 = vmatprep.subr.mxu0 0.0
    %82 = vmatpush1.msra.mxu0 0.0
    %83 = vmatprep.subr.mxu0 0.0
    %84 = vmatpush1.msra.mxu0 0.0
    %85 = vmatprep.subr.mxu0 0.0
    %86 = vmatpush1.msra.mxu0 0.0
    %87 = vmatprep.subr.mxu0 0.0
    %88 = vmatpush1.msra.mxu0 0.0
    %89 = vmatprep.subr.mxu0 0.0
    %90 = vmatpush1.msra.mxu0 0.0
    %91 = vmatprep.subr.mxu0 0.0
    %92 = vmatpush1.msra.mxu0 0.0
    %93 = vmatprep.subr.mxu0 0.0
    %94 = vmatpush1.msra.mxu0 0.0
    %95 = vmatprep.subr.mxu0 0.0
    %96 = vmatpush1.msra.mxu0 0.0
    %97 = vmatprep.subr.mxu0 0.0
    %98 = vmatpush1.msra.mxu0 0.0
    %99 = vmatprep.subr.mxu0 0.0
    %100 = vmatpush1.msra.mxu0 0.0
    %101 = vmatprep.subr.mxu0 0.0
    %102 = vmatpush1.msra.mxu0 0.0
    %103 = vmatprep.subr.mxu0 0.0
    %104 = vmatpush1.msra.mxu0 0.0
    %105 = vmatprep.mubr.f32.mxu0 0.0
    %106 = vmatmul.mubr.f32.gmra.mrb[0].mxu0 %v39
    %v107 = vpop.f32.mrb[0].mxu0
    %v108 = vadd.f32 %v35, %v107
    %v109 = vpop.f32.mrb[0].mxu0
    %110 = vdwg.mxu0
    %v111 = vmax.f32 %v108, 0.0
    %v112 = vld [vmem:[%s3] sm:$0xff]
    %v113 = vld [vmem:[%s3 + $0x8] sm:$0xff]
    %v114 = vld [vmem:[%s3 + $0x10] sm:$0xff]
    %v115 = vld [vmem:[%s3 + $0x18] sm:$0xff]
    %v116 = vld [vmem:[%s3 + $0x20] sm:$0xff]
    %v117 = vld [vmem:[%s3 + $0x28] sm:$0xff]
    %v118 = vld [vmem:[%s3 + $0x30] sm:$0xff]
    %v119 = vld [vmem:[%s3 + $0x38] sm:$0xff]
    %v120 = vld [vmem:[%s3 + $0x40] sm:$0xff]
    %v121 = vld [vmem:[%s3 + $0x48] sm:$0xff]
    %v122 = vld [vmem:[%s3 + $0x50] sm:$0xff]
    %v123 = vld [vmem:[%s3 + $0x58] sm:$0xff]
    %v124 = vld [vmem:[%s3 + $0x60] sm:$0xff]
    %v125 = vld [vmem:[%s3 + $0x68] sm:$0xff]
    %v126 = vld [vmem:[%s3 + $0x70] sm:$0xff]
    %v127 = vld [vmem:[%s3 + $0x78] sm:$0xff]
    %v128 = vld [vmem:[%s4] sm:$0x1]
    %v130 = vlaneseq
    %v131 = vshrl.u32 %v130, 7
    %v132 = vsub.s32 0, %v131
    %v133 = vrot.slane %v128, %v132
    %135 = vmatprep.subr.mxu0 0.0
    %136 = vmatpush1.msra.mxu0 %v112
    %137 = vmatprep.subr.mxu0 0.0
    %138 = vmatpush1.msra.mxu0 %v113
    %139 = vmatprep.subr.mxu0 0.0
    %140 = vmatpush1.msra.mxu0 %v114
    %141 = vmatprep.subr.mxu0 0.0
    %142 = vmatpush1.msra.mxu0 %v115
    %143 = vmatprep.subr.mxu0 0.0
    %144 = vmatpush1.msra.mxu0 %v116
    %145 = vmatprep.subr.mxu0 0.0
    %146 = vmatpush1.msra.mxu0 %v117
    %147 = vmatprep.subr.mxu0 0.0
    %148 = vmatpush1.msra.mxu0 %v118
    %149 = vmatprep.subr.mxu0 0.0
    %150 = vmatpush1.msra.mxu0 %v119
    %151 = vmatprep.subr.mxu0 0.0
    %152 = vmatpush1.msra.mxu0 %v120
    %153 = vmatprep.subr.mxu0 0.0
    %154 = vmatpush1.msra.mxu0 %v121
    %155 = vmatprep.subr.mxu0 0.0
    %156 = vmatpush1.msra.mxu0 %v122
    %157 = vmatprep.subr.mxu0 0.0
    %158 = vmatpush1.msra.mxu0 %v123
    %159 = vmatprep.subr.mxu0 0.0
    %160 = vmatpush1.msra.mxu0 %v124
    %161 = vmatprep.subr.mxu0 0.0
    %162 = vmatpush1.msra.mxu0 %v125
    %163 = vmatprep.subr.mxu0 0.0
    %164 = vmatpush1.msra.mxu0 %v126
    %165 = vmatprep.subr.mxu0 0.0
    %166 = vmatpush1.msra.mxu0 %v127
    %167 = vmatprep.subr.mxu0 0.0
    %168 = vmatpush1.msra.mxu0 0.0
    %169 = vmatprep.subr.mxu0 0.0
    %170 = vmatpush1.msra.mxu0 0.0
    %171 = vmatprep.subr.mxu0 0.0
    %172 = vmatpush1.msra.mxu0 0.0
    %173 = vmatprep.subr.mxu0 0.0
    %174 = vmatpush1.msra.mxu0 0.0
    %175 = vmatprep.subr.mxu0 0.0
    %176 = vmatpush1.msra.mxu0 0.0
    %177 = vmatprep.subr.mxu0 0.0
    %178 = vmatpush1.msra.mxu0 0.0
    %179 = vmatprep.subr.mxu0 0.0
    %180 = vmatpush1.msra.mxu0 0.0
    %181 = vmatprep.subr.mxu0 0.0
    %182 = vmatpush1.msra.mxu0 0.0
    %183 = vmatprep.subr.mxu0 0.0
    %184 = vmatpush1.msra.mxu0 0.0
    %185 = vmatprep.subr.mxu0 0.0
    %186 = vmatpush1.msra.mxu0 0.0
    %187 = vmatprep.subr.mxu0 0.0
    %188 = vmatpush1.msra.mxu0 0.0
    %189 = vmatprep.subr.mxu0 0.0
    %190 = vmatpush1.msra.mxu0 0.0
    %191 = vmatprep.subr.mxu0 0.0
    %192 = vmatpush1.msra.mxu0 0.0
    %193 = vmatprep.subr.mxu0 0.0
    %194 = vmatpush1.msra.mxu0 0.0
    %195 = vmatprep.subr.mxu0 0.0
    %196 = vmatpush1.msra.mxu0 0.0
    %197 = vmatprep.subr.mxu0 0.0
    %198 = vmatpush1.msra.mxu0 0.0
    %199 = vmatprep.mubr.f32.mxu0 0.0
    %200 = vmatmul.mubr.f32.gmra.mrb[0].mxu0 %v111
    %v201 = vpop.f32.mrb[0].mxu0
    %v202 = vadd.f32 %v133, %v201
    %v203 = vpop.f32.mrb[0].mxu0
    %204 = vdwg.mxu0
    %vm205 = vcmask 80896
    %206 = vst.msk [vmem:[#allocation2] sm:$0xff] %vm205, %v202
    // Predicated region
    $region22: #{neural_net_forward.1} parent=1 // pred_check
      _
    $region23: #{neural_net_forward.1} parent=1 // pred_check_branch
      %208 = sbr.rel (0) target = $region25
    $region24: #{neural_net_forward.1} parent=1 // pred_region
      %s210 = ssub.s32 128, 128
      %211 = vsyncadd [#allocation3], %s210
      %s213 = sshll.u32 [#allocation2], 4
      %s214 = int_to_ptr.vmem [resolvable:$true] %s213
      %216 = dma.vmem_to_hbm [thread:$0]  %s214, 128, %s5, [#allocation3]
    $region25: #{neural_net_forward.1} parent=1 // pred_fallthru
      _
    // Predicated region
    $region26: #{neural_net_forward.1} parent=1 // pred_check
      _
    $region27: #{neural_net_forward.1} parent=1 // pred_check_branch
      %218 = sbr.rel (0) target = $region29
    $region28: #{neural_net_forward.1} parent=1 // pred_region
      %219 = dma.done [#allocation3], 128
    $region29: #{neural_net_forward.1} parent=1 // pred_fallthru
      _
    %220 = vsyncpa [#allocation3], 1

</llo_original>
